<compile_context>
chip_gen: v6e
topology: v6e:2x2x1
jax: 0.10.0
libtpu: 0.0.40
codegen_flags: <defaults>
</compile_context>

<pallas_src>
import functools

import jax
import jax.numpy as jnp
from jax.experimental import pallas as pl
from jax.experimental.pallas import tpu as pltpu


def _ffn_kernel(x_ref, w1_ref, b1_ref, w2_ref, b2_ref, o_ref, acc_ref):
    # x_ref:  (TM, E)  compute dtype (bf16)
    # w1_ref: (E, TH)  compute dtype
    # b1_ref: (1, TH)  f32
    # w2_ref: (TH, E)  compute dtype
    # b2_ref: (1, E)   f32
    # o_ref:  (TM, E)  output dtype
    # acc_ref:(TM, E)  f32 accumulator (persists across the H grid axis)
    h_idx = pl.program_id(1)

    @pl.when(h_idx == 0)
    def _init():
        # Start the accumulator at the broadcast second-layer bias so the
        # bias add happens exactly once per output tile.
        acc_ref[...] = jnp.broadcast_to(b2_ref[...], acc_ref.shape).astype(jnp.float32)

    # First linear for this hidden tile: (TM, E) @ (E, TH) -> f32 accumulate.
    h = jnp.dot(x_ref[...], w1_ref[...], preferred_element_type=jnp.float32)
    h = h + b1_ref[...]

    # GPT-2 tanh-approximation GELU, computed in f32 (VPU/EUP path):
    # 0.5 * x * (1 + tanh(sqrt(2/pi) * (x + 0.044715 * x^3)))
    c = jnp.float32(0.7978845608028654)  # sqrt(2/pi)
    g = 0.5 * h * (1.0 + jnp.tanh(c * (h + 0.044715 * (h * h * h))))

    # Second linear partial sum: (TM, TH) @ (TH, E), bf16 in / f32 accumulate.
    acc_ref[...] += jnp.dot(g.astype(w2_ref.dtype), w2_ref[...],
                            preferred_element_type=jnp.float32)

    @pl.when(h_idx == pl.num_programs(1) - 1)
    def _finalize():
        o_ref[...] = acc_ref[...].astype(o_ref.dtype)


def _round_up(a, b):
    return -(-a // b) * b


@functools.partial(jax.jit, static_argnames=("tile_m", "tile_h", "compute_dtype"))
def feed_forward(x, w1, b1, w2, b2, *, tile_m=256, tile_h=512,
                 compute_dtype=jnp.bfloat16):
    """x: (B, S, E); w1: (E, 4E); b1: (4E,); w2: (4E, E); b2: (E,).

    Weights are stored as (in_features, out_features), i.e. torch Linear's W.T,
    so the kernel computes x @ W1 + b1 -> GELU -> (.) @ W2 + b2.
    """
    B, S, E = x.shape
    H = w1.shape[1]
    M = B * S

    # Matmul operands in compute dtype (bf16 in / f32 accumulate); biases f32.
    x2d = x.reshape(M, E).astype(compute_dtype)
    w1c = w1.astype(compute_dtype)
    w2c = w2.astype(compute_dtype)
    b1_2d = b1.reshape(1, H).astype(jnp.float32)
    b2_2d = b2.reshape(1, E).astype(jnp.float32)

    # --- Row (M) tiling: large tiles, padded to a packed-sublane multiple. ---
    SUBLANE = 16  # bf16 packs 16 rows per vreg sublane group
    tm = _round_up(min(tile_m, _round_up(M, SUBLANE)), SUBLANE)
    m_pad = _round_up(M, tm)
    if m_pad != M:
        x2d = jnp.pad(x2d, ((0, m_pad - M), (0, 0)))

    # --- Hidden (H) tiling: stream weight slabs instead of full residency. ---
    # TH must be a multiple of 128 (lane dim of W1 tile / sublane dim of W2
    # tile) or equal to H; fall back to whole-H when it doesn't divide evenly.
    if tile_h < H and H % tile_h == 0 and tile_h % 128 == 0:
        th = tile_h
    else:
        th = H

    grid = (m_pad // tm, H // th)
    out_dtype = x.dtype
    itemsize = lambda a: jnp.dtype(a.dtype).itemsize

    cost = pl.CostEstimate(
        flops=4 * m_pad * E * H,           # two (M,E,H) matmuls
        transcendentals=m_pad * H,         # one tanh per hidden activation
        bytes_accessed=(x2d.size * itemsize(x2d)
                        + w1c.size * itemsize(w1c)
                        + w2c.size * itemsize(w2c)
                        + b1_2d.size * 4 + b2_2d.size * 4
                        + m_pad * E * jnp.dtype(out_dtype).itemsize),
    )

    out2d = pl.pallas_call(
        _ffn_kernel,
        out_shape=jax.ShapeDtypeStruct((m_pad, E), out_dtype),
        grid_spec=pltpu.PrefetchScalarGridSpec(
            num_scalar_prefetch=0,
            grid=grid,
            in_specs=[
                pl.BlockSpec((tm, E), lambda i, h: (i, 0)),   # x rows
                pl.BlockSpec((E, th), lambda i, h: (0, h)),   # W1 hidden slab
                pl.BlockSpec((1, th), lambda i, h: (0, h)),   # b1 slab
                pl.BlockSpec((th, E), lambda i, h: (h, 0)),   # W2 hidden slab
                pl.BlockSpec((1, E), lambda i, h: (0, 0)),    # b2 (constant)
            ],
            out_specs=pl.BlockSpec((tm, E), lambda i, h: (i, 0)),
            scratch_shapes=[pltpu.VMEM((tm, E), jnp.float32)],
        ),
        compiler_params=pltpu.CompilerParams(
            dimension_semantics=("parallel", "arbitrary")),
        cost_estimate=cost,
    )(x2d, w1c, b1_2d, w2c, b2_2d)

    if m_pad != M:
        out2d = out2d[:M]
    return out2d.reshape(B, S, E)


def _reference(x, w1, b1, w2, b2, compute_dtype=jnp.bfloat16):
    """Pure-JAX reference mirroring the kernel's mixed precision."""
    f32 = jnp.float32
    B, S, E = x.shape
    xc = x.reshape(-1, E).astype(compute_dtype).astype(f32)
    w1c = w1.astype(compute_dtype).astype(f32)
    w2c = w2.astype(compute_dtype).astype(f32)
    h = jnp.dot(xc, w1c, precision=jax.lax.Precision.HIGHEST) + b1.astype(f32)
    c = jnp.sqrt(2.0 / jnp.pi).astype(f32)
    g = 0.5 * h * (1.0 + jnp.tanh(c * (h + 0.044715 * h ** 3)))
    g = g.astype(compute_dtype).astype(f32)
    out = jnp.dot(g, w2c, precision=jax.lax.Precision.HIGHEST) + b2.astype(f32)
    return out.reshape(B, S, E).astype(x.dtype)


if __name__ == "__main__":
    # Small config consistent with the module: emb_dim=32 -> hidden=4*32=128.
    # (Production configs should use E % 128 == 0 for lane-dense stores.)
    B, S, E = 2, 8, 32
    H = 4 * E

    key = jax.random.PRNGKey(0)
    kx, kw1, kb1, kw2, kb2 = jax.random.split(key, 5)

    x = jax.random.normal(kx, (B, S, E), dtype=jnp.float32)
    # Deterministic nn.Linear-style init, stored as (in_features, out_features).
    w1 = jax.random.uniform(kw1, (E, H), jnp.float32, -1.0, 1.0) / jnp.sqrt(E)
    b1 = jax.random.uniform(kb1, (H,), jnp.float32, -1.0, 1.0) / jnp.sqrt(E)
    w2 = jax.random.uniform(kw2, (H, E), jnp.float32, -1.0, 1.0) / jnp.sqrt(H)
    b2 = jax.random.uniform(kb2, (E,), jnp.float32, -1.0, 1.0) / jnp.sqrt(H)

    out = feed_forward(x, w1, b1, w2, b2)
    out = jax.block_until_ready(out)

    ref = _reference(x, w1, b1, w2, b2)
    assert out.shape == (B, S, E)
    assert jnp.allclose(out, ref, atol=5e-3, rtol=5e-3), (
        "mismatch vs reference: max abs err "
        f"{float(jnp.max(jnp.abs(out - ref)))}")

    print("KERNEL_OK")
</pallas_src>

<mosaic_0001>
module attributes {stable_mosaic.version = 11 : i64} {
  func.func @_ffn_kernel(%arg0: i32, %arg1: i32, %arg2: memref<16x32xbf16, #tpu.memory_space<vmem>>, %arg3: memref<32x128xbf16, #tpu.memory_space<vmem>>, %arg4: memref<1x128xf32, #tpu.memory_space<vmem>>, %arg5: memref<128x32xbf16, #tpu.memory_space<vmem>>, %arg6: memref<1x32xf32, #tpu.memory_space<vmem>>, %arg7: memref<16x32xf32, #tpu.memory_space<vmem>>, %arg8: memref<16x32xf32, #tpu.memory_space<vmem>>) attributes {dimension_semantics = [#tpu.dimension_semantics<parallel>, #tpu.dimension_semantics<arbitrary>], iteration_bounds = array<i64: 1, 1>, scalar_prefetch = 0 : i64, scratch_operands = 1 : i64, tpu.core_type = #tpu.core_type<tc>, window_params = [{transform_indices = @transform_0, window_bounds = array<i64: 16, 32>}, {transform_indices = @transform_1, window_bounds = array<i64: 32, 128>}, {transform_indices = @transform_2, window_bounds = array<i64: 1, 128>}, {transform_indices = @transform_3, window_bounds = array<i64: 128, 32>}, {pipeline_mode = #tpu.pipeline_mode<synchronous>, transform_indices = @transform_4, window_bounds = array<i64: 1, 32>}, {transform_indices = @transform_5, window_bounds = array<i64: 16, 32>}]} {
    %c0_i32 = arith.constant 0 : i32
    %0 = arith.cmpi eq, %arg1, %c0_i32 : i32
    %1 = arith.extui %0 : i1 to i32
    %c0_i32_0 = arith.constant 0 : i32
    %2 = arith.cmpi ne, %1, %c0_i32_0 : i32
    scf.if %2 {
      %c0_19 = arith.constant 0 : index
      %c0_20 = arith.constant 0 : index
      %31 = vector.load %arg6[%c0_19, %c0_20] : memref<1x32xf32, #tpu.memory_space<vmem>>, vector<1x32xf32>
      %32 = vector.shape_cast %31 : vector<1x32xf32> to vector<1x32xf32>
      %33 = vector.broadcast %32 : vector<1x32xf32> to vector<16x32xf32>
      %c0_21 = arith.constant 0 : index
      %c0_22 = arith.constant 0 : index
      %34 = vector.load %arg8[%c0_21, %c0_22] : memref<16x32xf32, #tpu.memory_space<vmem>>, vector<16x32xf32>
      tpu.vector_store %arg8[%c0_21, %c0_22], %33 {strides = array<i32>} : memref<16x32xf32, #tpu.memory_space<vmem>>, vector<16x32xf32>,
    } else {
    }
    %c0 = arith.constant 0 : index
    %c0_1 = arith.constant 0 : index
    %3 = vector.load %arg2[%c0, %c0_1] : memref<16x32xbf16, #tpu.memory_space<vmem>>, vector<16x32xbf16>
    %c0_2 = arith.constant 0 : index
    %c0_3 = arith.constant 0 : index
    %4 = vector.load %arg3[%c0_2, %c0_3] : memref<32x128xbf16, #tpu.memory_space<vmem>>, vector<32x128xbf16>
    %cst = arith.constant dense<0.000000e+00> : vector<16x128xf32>
    %5 = tpu.matmul %3, %4, %cst {dimension_numbers = #tpu.dot_dimension_numbers<[1], [0], [0], [1], [0, 0, 1, 1], [], []>} : vector<16x32xbf16>, vector<32x128xbf16>, vector<16x128xf32> -> vector<16x128xf32>
    %c0_4 = arith.constant 0 : index
    %c0_5 = arith.constant 0 : index
    %6 = vector.load %arg4[%c0_4, %c0_5] : memref<1x128xf32, #tpu.memory_space<vmem>>, vector<1x128xf32>
    %7 = vector.broadcast %6 : vector<1x128xf32> to vector<16x128xf32>
    %8 = arith.addf %5, %7 : vector<16x128xf32>
    %cst_6 = arith.constant 5.000000e-01 : f32
    %9 = vector.broadcast %cst_6 : f32 to vector<16x128xf32>
    %10 = arith.mulf %9, %8 : vector<16x128xf32>
    %11 = arith.mulf %8, %8 : vector<16x128xf32>
    %12 = arith.mulf %11, %8 : vector<16x128xf32>
    %cst_7 = arith.constant 4.471500e-02 : f32
    %13 = vector.broadcast %cst_7 : f32 to vector<16x128xf32>
    %14 = arith.mulf %13, %12 : vector<16x128xf32>
    %15 = arith.addf %8, %14 : vector<16x128xf32>
    %cst_8 = arith.constant 0.797884583 : f32
    %16 = vector.broadcast %cst_8 : f32 to vector<16x128xf32>
    %17 = arith.mulf %16, %15 : vector<16x128xf32>
    %18 = math.tanh %17 : vector<16x128xf32>
    %cst_9 = arith.constant 1.000000e+00 : f32
    %19 = vector.broadcast %cst_9 : f32 to vector<16x128xf32>
    %20 = arith.addf %19, %18 : vector<16x128xf32>
    %21 = arith.mulf %10, %20 : vector<16x128xf32>
    %c0_10 = arith.constant 0 : index
    %c0_11 = arith.constant 0 : index
    %22 = vector.load %arg8[%c0_10, %c0_11] : memref<16x32xf32, #tpu.memory_space<vmem>>, vector<16x32xf32>
    %23 = arith.truncf %21 : vector<16x128xf32> to vector<16x128xbf16>
    %c0_12 = arith.constant 0 : index
    %c0_13 = arith.constant 0 : index
    %24 = vector.load %arg5[%c0_12, %c0_13] : memref<128x32xbf16, #tpu.memory_space<vmem>>, vector<128x32xbf16>
    %cst_14 = arith.constant dense<0.000000e+00> : vector<16x32xf32>
    %25 = tpu.matmul %23, %24, %cst_14 {dimension_numbers = #tpu.dot_dimension_numbers<[1], [0], [0], [1], [0, 0, 1, 1], [], []>} : vector<16x128xbf16>, vector<128x32xbf16>, vector<16x32xf32> -> vector<16x32xf32>
    %26 = arith.addf %22, %25 : vector<16x32xf32>
    %c0_15 = arith.constant 0 : index
    %c0_16 = arith.constant 0 : index
    %27 = vector.load %arg8[%c0_15, %c0_16] : memref<16x32xf32, #tpu.memory_space<vmem>>, vector<16x32xf32>
    tpu.vector_store %arg8[%c0_15, %c0_16], %26 {strides = array<i32>} : memref<16x32xf32, #tpu.memory_space<vmem>>, vector<16x32xf32>,
    %c0_i32_17 = arith.constant 0 : i32
    %28 = arith.cmpi eq, %arg1, %c0_i32_17 : i32
    %29 = arith.extui %28 : i1 to i32
    %c0_i32_18 = arith.constant 0 : i32
    %30 = arith.cmpi ne, %29, %c0_i32_18 : i32
    scf.if %30 {
      %c0_19 = arith.constant 0 : index
      %c0_20 = arith.constant 0 : index
      %31 = vector.load %arg8[%c0_19, %c0_20] : memref<16x32xf32, #tpu.memory_space<vmem>>, vector<16x32xf32>
      %c0_21 = arith.constant 0 : index
      %c0_22 = arith.constant 0 : index
      %32 = vector.load %arg7[%c0_21, %c0_22] : memref<16x32xf32, #tpu.memory_space<vmem>>, vector<16x32xf32>
      tpu.vector_store %arg7[%c0_21, %c0_22], %31 {strides = array<i32>} : memref<16x32xf32, #tpu.memory_space<vmem>>, vector<16x32xf32>,
    } else {
    }
    return
  }
  func.func @transform_0(%arg0: i32, %arg1: i32) -> (i32, i32) {
    %c0_i32 = arith.constant 0 : i32
    %c0_i32_0 = arith.constant 0 : i32
    return %arg0, %c0_i32 : i32, i32
  }
  func.func @transform_1(%arg0: i32, %arg1: i32) -> (i32, i32) {
    %c0_i32 = arith.constant 0 : i32
    %c0_i32_0 = arith.constant 0 : i32
    return %c0_i32, %arg1 : i32, i32
  }
  func.func @transform_2(%arg0: i32, %arg1: i32) -> (i32, i32) {
    %c0_i32 = arith.constant 0 : i32
    %c0_i32_0 = arith.constant 0 : i32
    return %c0_i32, %arg1 : i32, i32
  }
  func.func @transform_3(%arg0: i32, %arg1: i32) -> (i32, i32) {
    %c0_i32 = arith.constant 0 : i32
    %c0_i32_0 = arith.constant 0 : i32
    return %arg1, %c0_i32 : i32, i32
  }
  func.func @transform_4(%arg0: i32, %arg1: i32) -> (i32, i32) {
    %c0_i32 = arith.constant 0 : i32
    %c0_i32_0 = arith.constant 0 : i32
    %c0_i32_1 = arith.constant 0 : i32
    return %c0_i32, %c0_i32_0 : i32, i32
  }
  func.func @transform_5(%arg0: i32, %arg1: i32) -> (i32, i32) {
    %c0_i32 = arith.constant 0 : i32
    %c0_i32_0 = arith.constant 0 : i32
    return %arg0, %c0_i32 : i32, i32
  }
}

</mosaic_0001>

<llo_original>
// kernel: feed_forward.1
$region0: #{feed_forward.1}
  #allocation0 [shape = 'u32[]', space=smem, size = 0x4, offset = 0x4, fixed_abs, tag = 'smem constant byte address 0x4 - core index']
  #allocation1 [shape = 'u32[144,128]{1,0:T(1,128)}', space=vmem, size = 0x12000, scoped, tag = 'internal scratch']
  #allocation2 [shape = 'f32[16,32]{1,0:T(8,128)}', space=vmem, size = 0x2000, scoped, tag = 'scratch operand']
  %s0 = inlined_call_operand.vmem [shape: bf16[16,32], index: 0, kind: input, shape index: {}]
  %s1 = inlined_call_operand.vmem [shape: bf16[32,128], index: 1, kind: input, shape index: {}]
  %s2 = inlined_call_operand.vmem [shape: f32[1,128], index: 2, kind: input, shape index: {}]
  %s3 = inlined_call_operand.vmem [shape: bf16[128,32], index: 3, kind: input, shape index: {}]
  %s4 = inlined_call_operand.vmem [shape: f32[1,32], index: 4, kind: input, shape index: {}]
  %s5 = inlined_call_operand.hbm [shape: f32[16,32], index: 5, kind: output, shape index: {}]
  %s6 = sld [smem:[#allocation0]]
  $region38: #{feed_forward.1} parent=0
    _
  %s8 = ssub.s32 1, %s6
  %s9 = scalar_select 0, %s8, %s6
  $region1: #{feed_forward.1} parent=0
    #allocation3 [shape = 'u8[8192]{0}', space=vmem, size = 0x2000, scoped, tag = 'output window, operand 0, single buffered']
    #allocation4 [shape = 's32[1]{0}', space=sflag, size = 0x4, scoped, tag = 'scoped memory for feed_forward.1']
    %10 = vsyncpa [#allocation4], 0
    // Predicated region
    $region2: #{feed_forward.1} parent=1 // pred_check
      _
    $region3: #{feed_forward.1} parent=1 // pred_check_branch
      %12 = sbr.rel (0) target = $region5
    $region4: #{feed_forward.1} parent=1 // pred_region
      _
    $region5: #{feed_forward.1} parent=1 // pred_fallthru
      _
    // Predicated region
    $region6: #{feed_forward.1} parent=1 // pred_check
      _
    $region7: #{feed_forward.1} parent=1 // pred_check_branch
      %14 = sbr.rel (0) target = $region9
    $region8: #{feed_forward.1} parent=1 // pred_region
      _
    $region9: #{feed_forward.1} parent=1 // pred_fallthru
      _
    // Predicated region
    $region10: #{feed_forward.1} parent=1 // pred_check
      _
    $region11: #{feed_forward.1} parent=1 // pred_check_branch
      %16 = sbr.rel (0) target = $region13
    $region12: #{feed_forward.1} parent=1 // pred_region
      _
    $region13: #{feed_forward.1} parent=1 // pred_fallthru
      _
    // Predicated region
    $region14: #{feed_forward.1} parent=1 // pred_check
      _
    $region15: #{feed_forward.1} parent=1 // pred_check_branch
      %18 = sbr.rel (0) target = $region17
    $region16: #{feed_forward.1} parent=1 // pred_region
      _
    $region17: #{feed_forward.1} parent=1 // pred_fallthru
      _
    // Predicated region
    $region18: #{feed_forward.1} parent=1 // pred_check
      _
    $region19: #{feed_forward.1} parent=1 // pred_check_branch
      %20 = sbr.rel (0) target = $region21
    $region20: #{feed_forward.1} parent=1 // pred_region
      _
    $region21: #{feed_forward.1} parent=1 // pred_fallthru
      _
    %p22 = scmp.eq.s32.totalorder 0, 0
    // Predicated region
    $region22: #{feed_forward.1} parent=1 // pred_check
      %p23 = pneg %p22
    $region23: #{feed_forward.1} parent=1 // pred_check_branch
      %25 = sbr.rel (%p23) target = $region25
    $region24: #{feed_forward.1} parent=1 // pred_region
      %v26 = vld [vmem:[%s4] sm:$0x1]
      %v28 = vlaneseq
      %v29 = vshrl.u32 %v28, 7
      %v30 = vsub.s32 0, %v29
      %v31 = vrot.slane %v26, %v30
      %vm33 = vcmask 261120
      %34 = vst.msk [vmem:[#allocation2] sm:$0xff] %vm33, %v31
      %35 = vst.msk [vmem:[#allocation2 + $0x8] sm:$0xff] %vm33, %v31
    $region25: #{feed_forward.1} parent=1 // pred_fallthru
      _
    %v36 = vld [vmem:[%s0] sm:$0xf]
    %v37 = vld [vmem:[%s0 + $0x4] sm:$0xf]
    %v38 = vld [vmem:[%s1] sm:$0xf]
    %v39 = vld [vmem:[%s1 + $0x4] sm:$0xf]
    %v40 = vld [vmem:[%s1 + $0x8] sm:$0xf]
    %v41 = vld [vmem:[%s1 + $0xc] sm:$0xf]
    %v42 = vld [vmem:[%s2] sm:$0x1]
    %v44 = vlaneseq
    %v45 = vshrl.u32 %v44, 7
    %v46 = vsub.s32 0, %v45
    %v47 = vrot.slane %v42, %v46
    %v51 = vunpack.c.l.b16 %v36
    %v52 = vunpack.c.l.b16 %v37
    %v53 = vpack.c.b16 %v52, %v51
    %v58 = vunpack.c.l.b16 %v38
    %v59 = vunpack.c.l.b16 %v39
    %v60 = vunpack.c.l.b16 %v40
    %v61 = vunpack.c.l.b16 %v41
    %v62 = vpack.c.b16 %v59, %v58
    %v63 = vpack.c.b16 %v61, %v60
    %vm66 = vcmask 261120
    %v68 = vsel %vm66, %v53, 0
    %70 = vmatprep.subr.bf16.mxu0 0
    %71 = vmatpush1.bf16.msra.mxu0 0
    %72 = vmatprep.subr.bf16.mxu0 0
    %73 = vmatpush1.bf16.msra.mxu0 0
    %74 = vmatprep.subr.bf16.mxu0 0
    %75 = vmatpush1.bf16.msra.mxu0 0
    %76 = vmatprep.subr.bf16.mxu0 0
    %77 = vmatpush1.bf16.msra.mxu0 0
    %78 = vmatprep.subr.bf16.mxu0 0
    %79 = vmatpush1.bf16.msra.mxu0 0
    %80 = vmatprep.subr.bf16.mxu0 0
    %81 = vmatpush1.bf16.msra.mxu0 0
    %82 = vmatprep.subr.bf16.mxu0 0
    %83 = vmatpush1.bf16.msra.mxu0 %v63
    %84 = vmatprep.subr.bf16.mxu0 0
    %85 = vmatpush1.bf16.msra.mxu0 %v62
    %86 = vmatprep.subr.bf16.mxu0 0
    %87 = vmatpush2.bf16.msra.mxu0 0
    %88 = vmatprep.subr.bf16.mxu0 0
    %89 = vmatpush2.bf16.msra.mxu0 0
    %90 = vmatprep.subr.bf16.mxu0 0
    %91 = vmatpush2.bf16.msra.mxu0 0
    %92 = vmatprep.subr.bf16.mxu0 0
    %93 = vmatpush2.bf16.msra.mxu0 0
    %94 = vmatprep.subr.bf16.mxu0 0
    %95 = vmatpush2.bf16.msra.mxu0 0
    %96 = vmatprep.subr.bf16.mxu0 0
    %97 = vmatpush2.bf16.msra.mxu0 0
    %98 = vmatprep.subr.bf16.mxu0 0
    %99 = vmatpush2.bf16.msra.mxu0 0
    %100 = vmatprep.subr.bf16.mxu0 0
    %101 = vmatpush2.bf16.msra.mxu0 0
    %102 = vmatprep.mubr.bf16.mxu0 0
    %103 = vmatmul.mubr.bf16.gmra.mxu0 %v68
    %v104 = vpop.f32.mrf.mxu0
    %v105 = vadd.f32 %v47, %v104
    %v106 = vpop.f32.mrf.mxu0
    %v107 = vpop.f32.mrf.mxu0
    %v108 = vadd.f32 %v47, %v107
    %v109 = vpop.f32.mrf.mxu0
    %110 = vdwg.mxu0
    %v111 = vmul.f32 %v105, 0.5
    %v112 = vmul.f32 %v108, 0.5
    %v113 = vmul.f32 %v105, %v105
    %v114 = vmul.f32 %v108, %v108
    %v115 = vmul.f32 %v113, %v105
    %v116 = vmul.f32 %v114, %v108
    %v117 = vmul.f32 %v115, 0.044715
    %v118 = vmul.f32 %v116, 0.044715
    %v119 = vadd.f32 %v105, %v117
    %v120 = vadd.f32 %v108, %v118
    %v121 = vmul.f32 %v119, 0.7978846
    %v122 = vmul.f32 %v120, 0.7978846
    %v123 = vtanh.pop %v121
    %v124 = vtanh.pop %v122
    %v125 = vadd.f32 %v123, 1.0
    %v126 = vadd.f32 %v124, 1.0
    %v127 = vmul.f32 %v111, %v125
    %v128 = vmul.f32 %v112, %v126
    %v129 = vld [vmem:[#allocation2] sm:$0xff]
    %v130 = vld [vmem:[#allocation2 + $0x8] sm:$0xff]
    %v131 = vpack.c.bf16 %v128, %v127
    %v132 = vld [vmem:[%s3] sm:$0xf]
    %v133 = vld [vmem:[%s3 + $0x4] sm:$0xf]
    %v134 = vld [vmem:[%s3 + $0x8] sm:$0xf]
    %v135 = vld [vmem:[%s3 + $0xc] sm:$0xf]
    %v136 = vld [vmem:[%s3 + $0x10] sm:$0xf]
    %v137 = vld [vmem:[%s3 + $0x14] sm:$0xf]
    %v138 = vld [vmem:[%s3 + $0x18] sm:$0xf]
    %v139 = vld [vmem:[%s3 + $0x1c] sm:$0xf]
    %v140 = vld [vmem:[%s3 + $0x20] sm:$0xf]
    %v141 = vld [vmem:[%s3 + $0x24] sm:$0xf]
    %v142 = vld [vmem:[%s3 + $0x28] sm:$0xf]
    %v143 = vld [vmem:[%s3 + $0x2c] sm:$0xf]
    %v144 = vld [vmem:[%s3 + $0x30] sm:$0xf]
    %v145 = vld [vmem:[%s3 + $0x34] sm:$0xf]
    %v146 = vld [vmem:[%s3 + $0x38] sm:$0xf]
    %v147 = vld [vmem:[%s3 + $0x3c] sm:$0xf]
    %v164 = vunpack.c.l.b16 %v132
    %v165 = vunpack.c.l.b16 %v133
    %v166 = vunpack.c.l.b16 %v134
    %v167 = vunpack.c.l.b16 %v135
    %v168 = vunpack.c.l.b16 %v136
    %v169 = vunpack.c.l.b16 %v137
    %v170 = vunpack.c.l.b16 %v138
    %v171 = vunpack.c.l.b16 %v139
    %v172 = vunpack.c.l.b16 %v140
    %v173 = vunpack.c.l.b16 %v141
    %v174 = vunpack.c.l.b16 %v142
    %v175 = vunpack.c.l.b16 %v143
    %v176 = vunpack.c.l.b16 %v144
    %v177 = vunpack.c.l.b16 %v145
    %v178 = vunpack.c.l.b16 %v146
    %v179 = vunpack.c.l.b16 %v147
    %v180 = vpack.c.b16 %v165, %v164
    %v181 = vpack.c.b16 %v167, %v166
    %v182 = vpack.c.b16 %v169, %v168
    %v183 = vpack.c.b16 %v171, %v170
    %v184 = vpack.c.b16 %v173, %v172
    %v185 = vpack.c.b16 %v175, %v174
    %v186 = vpack.c.b16 %v177, %v176
    %v187 = vpack.c.b16 %v179, %v178
    %196 = vmatprep.subr.bf16.mxu0 0
    %197 = vmatpush1.bf16.msra.mxu0 %v187
    %198 = vmatprep.subr.bf16.mxu0 0
    %199 = vmatpush1.bf16.msra.mxu0 %v186
    %200 = vmatprep.subr.bf16.mxu0 0
    %201 = vmatpush1.bf16.msra.mxu0 %v185
    %202 = vmatprep.subr.bf16.mxu0 0
    %203 = vmatpush1.bf16.msra.mxu0 %v184
    %204 = vmatprep.subr.bf16.mxu0 0
    %205 = vmatpush1.bf16.msra.mxu0 %v183
    %206 = vmatprep.subr.bf16.mxu0 0
    %207 = vmatpush1.bf16.msra.mxu0 %v182
    %208 = vmatprep.subr.bf16.mxu0 0
    %209 = vmatpush1.bf16.msra.mxu0 %v181
    %210 = vmatprep.subr.bf16.mxu0 0
    %211 = vmatpush1.bf16.msra.mxu0 %v180
    %212 = vmatprep.subr.bf16.mxu0 0
    %213 = vmatpush2.bf16.msra.mxu0 0
    %214 = vmatprep.subr.bf16.mxu0 0
    %215 = vmatpush2.bf16.msra.mxu0 0
    %216 = vmatprep.subr.bf16.mxu0 0
    %217 = vmatpush2.bf16.msra.mxu0 0
    %218 = vmatprep.subr.bf16.mxu0 0
    %219 = vmatpush2.bf16.msra.mxu0 0
    %220 = vmatprep.subr.bf16.mxu0 0
    %221 = vmatpush2.bf16.msra.mxu0 0
    %222 = vmatprep.subr.bf16.mxu0 0
    %223 = vmatpush2.bf16.msra.mxu0 0
    %224 = vmatprep.subr.bf16.mxu0 0
    %225 = vmatpush2.bf16.msra.mxu0 0
    %226 = vmatprep.subr.bf16.mxu0 0
    %227 = vmatpush2.bf16.msra.mxu0 0
    %228 = vmatprep.mubr.bf16.mxu0 0
    %229 = vmatmul.mubr.bf16.gmra.mxu0 %v131
    %v230 = vpop.f32.mrf.mxu0
    %v231 = vadd.f32 0.0, %v230
    %v232 = vpop.f32.mrf.mxu0
    %v233 = vpop.f32.mrf.mxu0
    %v234 = vadd.f32 0.0, %v233
    %v235 = vpop.f32.mrf.mxu0
    %236 = vdwg.mxu0
    %v237 = vadd.f32 %v129, %v231
    %v238 = vadd.f32 %v130, %v234
    %239 = vst.msk [vmem:[#allocation2] sm:$0xff] %vm66, %v237
    %240 = vst.msk [vmem:[#allocation2 + $0x8] sm:$0xff] %vm66, %v238
    // Predicated region
    $region26: #{feed_forward.1} parent=1 // pred_check
      %p241 = pneg %p22
    $region27: #{feed_forward.1} parent=1 // pred_check_branch
      %243 = sbr.rel (%p241) target = $region29
    $region28: #{feed_forward.1} parent=1 // pred_region
      %v244 = vld [vmem:[#allocation2] sm:$0xff]
      %v245 = vld [vmem:[#allocation2 + $0x8] sm:$0xff]
      %246 = vst.msk [vmem:[#allocation3] sm:$0xff] %vm66, %v244
      %247 = vst.msk [vmem:[#allocation3 + $0x8] sm:$0xff] %vm66, %v245
    $region29: #{feed_forward.1} parent=1 // pred_fallthru
      _
    // Predicated region
    $region30: #{feed_forward.1} parent=1 // pred_check
      _
    $region31: #{feed_forward.1} parent=1 // pred_check_branch
      %249 = sbr.rel (0) target = $region33
    $region32: #{feed_forward.1} parent=1 // pred_region
      %s251 = ssub.s32 256, 256
      %252 = vsyncadd [#allocation4], %s251
      %s253 = sshll.u32 [#allocation3], 4
      %s254 = int_to_ptr.vmem [resolvable:$true] %s253
      %259 = dma.vmem_to_hbm [thread:$0]  %s254, 256, %s5, [#allocation4], 128, 128, 8
    $region33: #{feed_forward.1} parent=1 // pred_fallthru
      _
    // Predicated region
    $region34: #{feed_forward.1} parent=1 // pred_check
      _
    $region35: #{feed_forward.1} parent=1 // pred_check_branch
      %261 = sbr.rel (0) target = $region37
    $region36: #{feed_forward.1} parent=1 // pred_region
      %262 = dma.done [#allocation4], 256
    $region37: #{feed_forward.1} parent=1 // pred_fallthru
      _
    %263 = vsyncpa [#allocation4], 1

</llo_original>
